<compile_context>
chip_gen: v5e
topology: v5e:2x2
jax: 0.10.0
libtpu: 0.0.40
codegen_flags: <defaults>
</compile_context>

<pallas_src>
import math
import functools

import jax
import jax.numpy as jnp
import numpy as np
from jax import lax
from jax.experimental import pallas as pl
from jax.experimental.pallas import tpu as pltpu


def _attention_kernel(x_ref, w_ref, b_ref, out_ref, *, bt, seq, c_in, k_sz, v_sz):
    # x_ref: (Bt*T, C)   w_ref: (C, 2K+V)   b_ref: (1, 2K+V)   out_ref: (Bt, T, C+V)
    x2 = x_ref[...]

    # Fused QKV projection: one MXU pass with M = Bt*T, N = 2K+V.
    # Wq/bq already carry the folded 1/sqrt(key_size) score scale.
    qkv = jnp.dot(x2, w_ref[...], preferred_element_type=jnp.float32) + b_ref[...]
    q = qkv[:, :k_sz].reshape(bt, seq, k_sz)
    k = qkv[:, k_sz:2 * k_sz].reshape(bt, seq, k_sz)
    v = qkv[:, 2 * k_sz:].reshape(bt, seq, v_sz)

    # Batched scores over the whole tile: (Bt, Tq, Tk), contraction on key_size.
    scores = jnp.einsum("bqd,bkd->bqk", q, k, preferred_element_type=jnp.float32)

    # Reference mask: mask[q_idx, k_idx] = (k_idx > q_idx) -> -inf.
    # One additive (1, T, T) mask broadcast over the batch block.
    qi = lax.broadcasted_iota(jnp.int32, (seq, seq), 0)   # query index
    ki = lax.broadcasted_iota(jnp.int32, (seq, seq), 1)   # key index
    mask_add = jnp.where(ki > qi, jnp.float32(-jnp.inf), jnp.float32(0.0))
    scores = scores + mask_add[None, :, :]

    # torch F.softmax(..., dim=1): normalize over the QUERY axis (axis 1).
    # Every key column keeps its diagonal entry unmasked, so the max is finite
    # and masked entries become exactly 0 after exp.
    m = jnp.max(scores, axis=1, keepdims=True)            # (Bt, 1, Tk)
    e = jnp.exp(scores - m)
    s = jnp.sum(e, axis=1, keepdims=True)                 # (Bt, 1, Tk)
    # One (Bt, 1, Tk) reciprocal instead of a (Tq, Tk) divide per element.
    # approx=True (EUP) is too coarse for the 1e-5 check; approx=False is exact.
    p = e * pl.reciprocal(s, approx=False)

    attn = jnp.einsum("bqk,bkv->bqv", p, v, preferred_element_type=jnp.float32)

    # torch.cat((inputs, attn), dim=2): two whole-region stores, no per-element
    # writes.  (x2.reshape splits only the leading/sublane dim; layout-free for
    # T a multiple of 8.)
    out_ref[:, :, :c_in] = x2.reshape(bt, seq, c_in).astype(out_ref.dtype)
    out_ref[:, :, c_in:] = attn.astype(out_ref.dtype)


def _pick_batch_block(batch, seq, c_in, k_sz, v_sz, *,
                      vmem_budget_bytes=6 << 20, min_grid_steps=8, min_rows=512):
    """Largest divisor of `batch` whose per-step VMEM footprint fits the budget.

    The budget accounts for double-buffered input/output blocks plus in-flight
    f32 intermediates.  When the batch is large enough that each step still
    carries >= `min_rows` sublane rows, at least `min_grid_steps` grid
    iterations are kept so the BlockSpec pipeline can overlap DMA with compute
    (and both v7x TensorCores get work on the "parallel" axis).
    """
    c_out = c_in + v_sz
    per_elem = 4 * (
        2 * seq * c_in                 # x block, double buffered
        + 2 * seq * c_out              # out block, double buffered
        + seq * (2 * k_sz + v_sz)      # fused qkv
        + 3 * seq * seq                # scores, exp, probabilities
        + seq * v_sz                   # attn
    )
    cap = max(1, vmem_budget_bytes // per_elem)
    min_elems = max(1, -(-min_rows // seq))            # ceil(min_rows / seq)
    if batch // min_grid_steps >= min_elems:
        cap = min(cap, batch // min_grid_steps)
    cap = min(cap, batch)

    best = 1
    for d in range(1, cap + 1):
        # (d * seq) must satisfy the sublane rule for the flattened input block.
        if batch % d == 0 and ((d * seq) % 8 == 0 or d * seq == batch * seq):
            best = d
    if (best * seq) % 8 != 0 and best != batch:
        best = batch                                    # one full-batch step
    return best


def attention_block(inputs, wq, bq, wk, bk, wv, bv, key_size, *, batch_block=None):
    """inputs: (B, T, C).  Weights are (in, out) oriented; biases (1, out)."""
    B, T, C = inputs.shape
    K = wq.shape[1]
    V = wv.shape[1]
    F = 2 * K + V

    # Fuse the three projections; fold the 1/sqrt(key_size) score scale into the
    # query projection (exact when key_size is a power of two).
    inv_scale = 1.0 / math.sqrt(key_size)
    w_qkv = jnp.concatenate([wq * inv_scale, wk, wv], axis=1)   # (C, 2K+V)
    b_qkv = jnp.concatenate([bq * inv_scale, bk, bv], axis=1)   # (1, 2K+V)

    Bt = batch_block if batch_block is not None else _pick_batch_block(B, T, C, K, V)
    assert B % Bt == 0, "batch block must divide the batch size"

    # Wrapper-side flatten (free for a contiguous array): the kernel's input
    # block is already (Bt*T, C), no in-kernel reshape of the x tile.
    x2d = inputs.reshape(B * T, C)

    kernel = functools.partial(_attention_kernel, bt=Bt, seq=T, c_in=C, k_sz=K, v_sz=V)

    return pl.pallas_call(
        kernel,
        out_shape=jax.ShapeDtypeStruct((B, T, C + V), inputs.dtype),
        grid_spec=pltpu.PrefetchScalarGridSpec(
            num_scalar_prefetch=0,
            grid=(B // Bt,),
            in_specs=[
                pl.BlockSpec((Bt * T, C), lambda g: (g, 0)),     # x (flattened)
                pl.BlockSpec((C, F), lambda g: (0, 0)),          # fused Wqkv
                pl.BlockSpec((1, F), lambda g: (0, 0)),          # fused bqkv
            ],
            out_specs=pl.BlockSpec((Bt, T, C + V), lambda g: (g, 0, 0)),
        ),
        compiler_params=pltpu.CompilerParams(
            dimension_semantics=("parallel",)),
    )(x2d, w_qkv, b_qkv)


def _reference(inputs, wq, bq, wk, bk, wv, bv, key_size):
    """Pure-numpy reference mirroring the torch forward exactly."""
    x = np.asarray(inputs, dtype=np.float32)
    B, T, C = x.shape
    keys = x @ np.asarray(wk) + np.asarray(bk)
    query = x @ np.asarray(wq) + np.asarray(bq)
    values = x @ np.asarray(wv) + np.asarray(bv)
    temp = np.einsum("bqc,bkc->bqk", query, keys)
    mask = np.array([[1 if i > j else 0 for i in range(T)] for j in range(T)],
                    dtype=bool)
    temp = np.where(mask[None], -np.inf, temp)
    temp = temp / math.sqrt(key_size)
    temp = temp - temp.max(axis=1, keepdims=True)
    e = np.exp(temp)
    temp = e / e.sum(axis=1, keepdims=True)
    out = np.einsum("bqk,bkv->bqv", temp, values)
    return np.concatenate([x, out], axis=2)


if __name__ == "__main__":
    # Small shapes consistent with the module.
    B, T, C = 2, 8, 32          # batch, seq, in_channels
    key_size, value_size = 16, 16

    root = jax.random.PRNGKey(0)
    kx, kwq, kbq, kwk, kbk, kwv, kbv, kx2 = jax.random.split(root, 8)

    # Deterministic "Linear" parameters, stored as (in, out) for x @ W.
    bound = 1.0 / math.sqrt(C)
    wq = jax.random.uniform(kwq, (C, key_size), jnp.float32, -bound, bound)
    bq = jax.random.uniform(kbq, (1, key_size), jnp.float32, -bound, bound)
    wk = jax.random.uniform(kwk, (C, key_size), jnp.float32, -bound, bound)
    bk = jax.random.uniform(kbk, (1, key_size), jnp.float32, -bound, bound)
    wv = jax.random.uniform(kwv, (C, value_size), jnp.float32, -bound, bound)
    bv = jax.random.uniform(kbv, (1, value_size), jnp.float32, -bound, bound)

    x = jax.random.normal(kx, (B, T, C), jnp.float32)

    out = attention_block(x, wq, bq, wk, bk, wv, bv, key_size)
    out = jax.block_until_ready(out)
    ref = _reference(x, wq, bq, wk, bk, wv, bv, key_size)
    np.testing.assert_allclose(np.asarray(out), ref, rtol=1e-5, atol=1e-5)

    # Second (still small) check that exercises a multi-step grid / pipelining.
    B2 = 16
    x2 = jax.random.normal(kx2, (B2, T, C), jnp.float32)
    out2 = attention_block(x2, wq, bq, wk, bk, wv, bv, key_size, batch_block=2)
    out2 = jax.block_until_ready(out2)
    ref2 = _reference(x2, wq, bq, wk, bk, wv, bv, key_size)
    np.testing.assert_allclose(np.asarray(out2), ref2, rtol=1e-5, atol=1e-5)

    print("KERNEL_OK")
</pallas_src>

<mosaic_0001>
module attributes {stable_mosaic.version = 11 : i64} {
  func.func @_attention_kernel(%arg0: i32, %arg1: memref<16x32xf32, #tpu.memory_space<vmem>>, %arg2: memref<32x48xf32, #tpu.memory_space<vmem>>, %arg3: memref<1x48xf32, #tpu.memory_space<vmem>>, %arg4: memref<2x8x48xf32, #tpu.memory_space<vmem>>) attributes {dimension_semantics = [#tpu.dimension_semantics<parallel>], iteration_bounds = array<i64: 1>, scalar_prefetch = 0 : i64, scratch_operands = 0 : i64, tpu.core_type = #tpu.core_type<tc>, window_params = [{transform_indices = @transform_0, window_bounds = array<i64: 16, 32>}, {pipeline_mode = #tpu.pipeline_mode<synchronous>, transform_indices = @transform_1, window_bounds = array<i64: 32, 48>}, {pipeline_mode = #tpu.pipeline_mode<synchronous>, transform_indices = @transform_2, window_bounds = array<i64: 1, 48>}, {transform_indices = @transform_3, window_bounds = array<i64: 2, 8, 48>}]} {
    %c0 = arith.constant 0 : index
    %c0_0 = arith.constant 0 : index
    %0 = vector.load %arg1[%c0, %c0_0] : memref<16x32xf32, #tpu.memory_space<vmem>>, vector<16x32xf32>
    %c0_1 = arith.constant 0 : index
    %c0_2 = arith.constant 0 : index
    %1 = vector.load %arg2[%c0_1, %c0_2] : memref<32x48xf32, #tpu.memory_space<vmem>>, vector<32x48xf32>
    %cst = arith.constant dense<0.000000e+00> : vector<16x48xf32>
    %2 = tpu.matmul %0, %1, %cst {dimension_numbers = #tpu.dot_dimension_numbers<[1], [0], [0], [1], [0, 0, 1, 1], [], []>} : vector<16x32xf32>, vector<32x48xf32>, vector<16x48xf32> -> vector<16x48xf32>
    %c0_3 = arith.constant 0 : index
    %c0_4 = arith.constant 0 : index
    %3 = vector.load %arg3[%c0_3, %c0_4] : memref<1x48xf32, #tpu.memory_space<vmem>>, vector<1x48xf32>
    %4 = vector.broadcast %3 : vector<1x48xf32> to vector<16x48xf32>
    %5 = arith.addf %2, %4 : vector<16x48xf32>
    %6 = vector.extract_strided_slice %5 {offsets = [0, 0], sizes = [16, 16], strides = [1, 1]} : vector<16x48xf32> to vector<16x16xf32>
    %7 = vector.shape_cast %6 : vector<16x16xf32> to vector<2x8x16xf32>
    %8 = vector.extract_strided_slice %5 {offsets = [0, 16], sizes = [16, 16], strides = [1, 1]} : vector<16x48xf32> to vector<16x16xf32>
    %9 = vector.shape_cast %8 : vector<16x16xf32> to vector<2x8x16xf32>
    %10 = vector.extract_strided_slice %5 {offsets = [0, 32], sizes = [16, 16], strides = [1, 1]} : vector<16x48xf32> to vector<16x16xf32>
    %11 = vector.shape_cast %10 : vector<16x16xf32> to vector<2x8x16xf32>
    "tpu.trace_start"() <{level = 10 : i32, message = "bqd,bkd->bqk"}> : () -> ()
    %cst_5 = arith.constant dense<0.000000e+00> : vector<2x8x8xf32>
    %12 = tpu.matmul %7, %9, %cst_5 {dimension_numbers = #tpu.dot_dimension_numbers<[2], [2], [1], [1], [0, 0, 0, 1, 1, 1], [0], [0]>} : vector<2x8x16xf32>, vector<2x8x16xf32>, vector<2x8x8xf32> -> vector<2x8x8xf32>
    "tpu.trace_stop"() : () -> ()
    %13 = tpu.iota {dimensions = array<i32: 0>} : vector<8x8xi32>
    %14 = tpu.iota {dimensions = array<i32: 1>} : vector<8x8xi32>
    %15 = arith.cmpi sgt, %14, %13 : vector<8x8xi32>
    %cst_6 = arith.constant 0xFF800000 : f32
    %cst_7 = arith.constant 0.000000e+00 : f32
    %16 = vector.broadcast %cst_6 : f32 to vector<8x8xf32>
    %17 = vector.broadcast %cst_7 : f32 to vector<8x8xf32>
    %18 = arith.select %15, %16, %17 : vector<8x8xi1>, vector<8x8xf32>
    %19 = vector.shape_cast %18 : vector<8x8xf32> to vector<1x8x8xf32>
    %20 = vector.broadcast %19 : vector<1x8x8xf32> to vector<2x8x8xf32>
    %21 = arith.addf %12, %20 : vector<2x8x8xf32>
    %cst_8 = arith.constant dense<0xFF800000> : vector<2x8xf32>
    %22 = vector.multi_reduction <maximumf>, %21, %cst_8 [1] : vector<2x8x8xf32> to vector<2x8xf32>
    %23 = vector.shape_cast %22 : vector<2x8xf32> to vector<2x1x8xf32>
    %24 = vector.broadcast %23 : vector<2x1x8xf32> to vector<2x8x8xf32>
    %25 = arith.subf %21, %24 : vector<2x8x8xf32>
    %26 = math.exp %25 : vector<2x8x8xf32>
    %cst_9 = arith.constant dense<0.000000e+00> : vector<2x8xf32>
    %27 = vector.multi_reduction <add>, %26, %cst_9 [1] : vector<2x8x8xf32> to vector<2x8xf32>
    %28 = vector.shape_cast %27 : vector<2x8xf32> to vector<2x1x8xf32>
    %29 = tpu.reciprocal %28 : vector<2x1x8xf32> -> vector<2x1x8xf32>
    %30 = vector.broadcast %29 : vector<2x1x8xf32> to vector<2x8x8xf32>
    %31 = arith.mulf %26, %30 : vector<2x8x8xf32>
    "tpu.trace_start"() <{level = 10 : i32, message = "bqk,bkv->bqv"}> : () -> ()
    %cst_10 = arith.constant dense<0.000000e+00> : vector<2x8x16xf32>
    %32 = tpu.matmul %31, %11, %cst_10 {dimension_numbers = #tpu.dot_dimension_numbers<[2], [1], [1], [2], [0, 0, 0, 1, 1, 2], [0], [0]>} : vector<2x8x8xf32>, vector<2x8x16xf32>, vector<2x8x16xf32> -> vector<2x8x16xf32>
    "tpu.trace_stop"() : () -> ()
    %33 = vector.shape_cast %0 : vector<16x32xf32> to vector<2x8x32xf32>
    %c0_11 = arith.constant 0 : index
    %c0_12 = arith.constant 0 : index
    %c0_13 = arith.constant 0 : index
    %34 = vector.load %arg4[%c0_11, %c0_12, %c0_13] : memref<2x8x48xf32, #tpu.memory_space<vmem>>, vector<2x8x32xf32>
    tpu.vector_store %arg4[%c0_11, %c0_12, %c0_13], %33 {strides = array<i32>} : memref<2x8x48xf32, #tpu.memory_space<vmem>>, vector<2x8x32xf32>,
    %c0_14 = arith.constant 0 : index
    %c0_15 = arith.constant 0 : index
    %c32 = arith.constant 32 : index
    %35 = vector.load %arg4[%c0_14, %c0_15, %c32] : memref<2x8x48xf32, #tpu.memory_space<vmem>>, vector<2x8x16xf32>
    tpu.vector_store %arg4[%c0_14, %c0_15, %c32], %32 {strides = array<i32>} : memref<2x8x48xf32, #tpu.memory_space<vmem>>, vector<2x8x16xf32>,
    return
  }
  func.func @transform_0(%arg0: i32) -> (i32, i32) {
    %c0_i32 = arith.constant 0 : i32
    %c0_i32_0 = arith.constant 0 : i32
    return %arg0, %c0_i32 : i32, i32
  }
  func.func @transform_1(%arg0: i32) -> (i32, i32) {
    %c0_i32 = arith.constant 0 : i32
    %c0_i32_0 = arith.constant 0 : i32
    %c0_i32_1 = arith.constant 0 : i32
    return %c0_i32, %c0_i32_0 : i32, i32
  }
  func.func @transform_2(%arg0: i32) -> (i32, i32) {
    %c0_i32 = arith.constant 0 : i32
    %c0_i32_0 = arith.constant 0 : i32
    %c0_i32_1 = arith.constant 0 : i32
    return %c0_i32, %c0_i32_0 : i32, i32
  }
  func.func @transform_3(%arg0: i32) -> (i32, i32, i32) {
    %c0_i32 = arith.constant 0 : i32
    %c0_i32_0 = arith.constant 0 : i32
    %c0_i32_1 = arith.constant 0 : i32
    return %arg0, %c0_i32, %c0_i32_0 : i32, i32, i32
  }
}

</mosaic_0001>

<llo_original>
// kernel: tpu_custom_call.1
$region0: #{tpu_custom_call.1}
  #allocation0 [shape = 'u32[]', space=smem, size = 0x4, offset = 0x4, fixed_abs, tag = 'smem constant byte address 0x4 - core index']
  #allocation1 [shape = 'u32[72,128]{1,0:T(1,128)}', space=vmem, size = 0x9000, scoped, tag = 'internal scratch']
  %s0 = inlined_call_operand.hbm [shape: f32[16,32], index: 0, kind: input, shape index: {}]
  %s1 = inlined_call_operand.hbm [shape: f32[32,48], index: 1, kind: input, shape index: {}]
  %s2 = inlined_call_operand.vmem [shape: f32[1,48], index: 2, kind: input, shape index: {}]
  %s3 = inlined_call_operand.hbm [shape: f32[2,8,48], index: 3, kind: output, shape index: {}]
  %s4 = sld [smem:[#allocation0]]
  $region30: #{tpu_custom_call.1} parent=0
    _
  %s6 = ssub.s32 1, %s4
  %s7 = scalar_select 0, %s6, %s4
  $region1: #{tpu_custom_call.1} parent=0
    #allocation2 [shape = 'u8[8192]{0}', space=vmem, size = 0x2000, scoped, tag = 'input window, operand 0, single buffered']
    #allocation3 [shape = 's32[1]{0}', space=sflag, size = 0x4, scoped, tag = 'scoped memory for tpu_custom_call.1']
    #allocation4 [shape = 's32[1]{0}', space=sflag, size = 0x4, scoped, tag = 'scoped memory for tpu_custom_call.1']
    #allocation5 [shape = 'u8[16384]{0}', space=vmem, size = 0x4000, scoped, tag = 'input window, operand 1, single buffered']
    #allocation6 [shape = 's32[1]{0}', space=sflag, size = 0x4, scoped, tag = 'scoped memory for tpu_custom_call.1']
    #allocation7 [shape = 'u8[8192]{0}', space=vmem, size = 0x2000, scoped, tag = 'output window, operand 0, single buffered']
    %8 = vsyncpa [#allocation3], 0
    %9 = vsyncpa [#allocation6], 0
    %10 = vsyncpa [#allocation4], 0
    // Predicated region
    $region2: #{tpu_custom_call.1} parent=1 // pred_check
      _
    $region3: #{tpu_custom_call.1} parent=1 // pred_check_branch
      %12 = sbr.rel (0) target = $region5
    $region4: #{tpu_custom_call.1} parent=1 // pred_region
      %14 = vsyncadd [#allocation3], 0
      %s15 = sshll.u32 %s0, 4
      %s16 = int_to_ptr.hbm [resolvable:$true] %s15
      %s17 = sshll.u32 [#allocation2], 4
      %s18 = int_to_ptr.vmem [resolvable:$true] %s17
      %23 = dma.hbm_to_vmem [thread:$0]  %s16, 256, %s18, [#allocation3], 128, 128, 8
    $region5: #{tpu_custom_call.1} parent=1 // pred_fallthru
      _
    // Predicated region
    $region6: #{tpu_custom_call.1} parent=1 // pred_check
      _
    $region7: #{tpu_custom_call.1} parent=1 // pred_check_branch
      %25 = sbr.rel (0) target = $region9
    $region8: #{tpu_custom_call.1} parent=1 // pred_region
      %27 = vsyncadd [#allocation6], 0
      %s28 = sshll.u32 %s1, 4
      %s29 = int_to_ptr.hbm [resolvable:$true] %s28
      %s30 = sshll.u32 [#allocation5], 4
      %s31 = int_to_ptr.vmem [resolvable:$true] %s30
      %36 = dma.hbm_to_vmem [thread:$0]  %s29, 512, %s31, [#allocation6], 128, 128, 8
    $region9: #{tpu_custom_call.1} parent=1 // pred_fallthru
      _
    // Predicated region
    $region10: #{tpu_custom_call.1} parent=1 // pred_check
      _
    $region11: #{tpu_custom_call.1} parent=1 // pred_check_branch
      %38 = sbr.rel (0) target = $region13
    $region12: #{tpu_custom_call.1} parent=1 // pred_region
      _
    $region13: #{tpu_custom_call.1} parent=1 // pred_fallthru
      _
    // Predicated region
    $region14: #{tpu_custom_call.1} parent=1 // pred_check
      _
    $region15: #{tpu_custom_call.1} parent=1 // pred_check_branch
      %40 = sbr.rel (0) target = $region17
    $region16: #{tpu_custom_call.1} parent=1 // pred_region
      %42 = dma.done [#allocation3], 256
    $region17: #{tpu_custom_call.1} parent=1 // pred_fallthru
      _
    // Predicated region
    $region18: #{tpu_custom_call.1} parent=1 // pred_check
      _
    $region19: #{tpu_custom_call.1} parent=1 // pred_check_branch
      %44 = sbr.rel (0) target = $region21
    $region20: #{tpu_custom_call.1} parent=1 // pred_region
      %46 = dma.done [#allocation6], 512
    $region21: #{tpu_custom_call.1} parent=1 // pred_fallthru
      _
    %v47 = vld [vmem:[#allocation2] sm:$0xff]
    %v48 = vld [vmem:[#allocation2 + $0x8] sm:$0xff]
    %v49 = vld [vmem:[#allocation5] sm:$0xff]
    %v50 = vld [vmem:[#allocation5 + $0x8] sm:$0xff]
    %v51 = vld [vmem:[#allocation5 + $0x10] sm:$0xff]
    %v52 = vld [vmem:[#allocation5 + $0x18] sm:$0xff]
    %v53 = vld [vmem:[%s2] sm:$0x1]
    %v55 = vperm.slane %v53, 0
    %vm57 = vcmask 261120
    %v59 = vsel %vm57, %v47, 0
    %v62 = vsel %vm57, %v48, 0
    %64 = vmatpush.msra.mxu0 0.0
    %65 = vmatpush.msra.mxu0 0.0
    %66 = vmatpush.msra.mxu0 0.0
    %67 = vmatpush.msra.mxu0 0.0
    %68 = vmatpush.msra.mxu0 0.0
    %69 = vmatpush.msra.mxu0 0.0
    %70 = vmatpush.msra.mxu0 0.0
    %71 = vmatpush.msra.mxu0 0.0
    %72 = vmatpush.msra.mxu0 0.0
    %73 = vmatpush.msra.mxu0 0.0
    %74 = vmatpush.msra.mxu0 0.0
    %75 = vmatpush.msra.mxu0 0.0
    %76 = vmatpush.msra.mxu0 %v52
    %77 = vmatpush.msra.mxu0 %v51
    %78 = vmatpush.msra.mxu0 %v50
    %79 = vmatpush.msra.mxu0 %v49
    %80 = vmatmul.f32.gmra.mxu0 %v59
    %v81 = vpop.f32.mrf.mxu0
    %v82 = vadd.f32 %v55, %v81
    %83 = vmatmul.f32.gmra.mxu0 %v62
    %v84 = vpop.f32.mrf.mxu0
    %v85 = vadd.f32 %v55, %v84
    %86 = vdwg.mxu0
    %v87 = vlaneseq
    %v88 = vshrl.u32 %v87, 7
    %v89 = vlaneseq
    %v90 = vand.u32 %v89, 127
    %vm91 = vcmp.gt.s32.totalorder %v90, %v88
    %v92 = vsel %vm91, -inf, 0.0
    %94 = vrot.lane.b32.xlu0 %v82, 112
    %v95 = vpop.permute.xlu0 %94
    %vm96 = vcmask 130048
    %v97 = vsel %vm96, %v82, 0
    %v99 = vsel %vm96, %v95, 0
    %101 = vmatpush.xpose.msra.mxu0 0.0
    %102 = vmatpush.xpose.msra.mxu0 0.0
    %103 = vmatpush.xpose.msra.mxu0 0.0
    %104 = vmatpush.xpose.msra.mxu0 0.0
    %105 = vmatpush.xpose.msra.mxu0 0.0
    %106 = vmatpush.xpose.msra.mxu0 0.0
    %107 = vmatpush.xpose.msra.mxu0 0.0
    %108 = vmatpush.xpose.msra.mxu0 0.0
    %109 = vmatpush.xpose.msra.mxu0 0.0
    %110 = vmatpush.xpose.msra.mxu0 0.0
    %111 = vmatpush.xpose.msra.mxu0 0.0
    %112 = vmatpush.xpose.msra.mxu0 0.0
    %113 = vmatpush.xpose.msra.mxu0 0.0
    %114 = vmatpush.xpose.msra.mxu0 0.0
    %115 = vmatpush.xpose.msra.mxu0 0.0
    %116 = vmatpush.xpose.msra.mxu0 %v99
    %117 = vmatmul.f32.gmra.mxu0 %v97
    %v118 = vpop.f32.mrf.mxu0
    %v119 = vadd.f32 %v92, %v118
    %120 = vdwg.mxu0
    %122 = vrot.lane.b32.xlu0 %v85, 112
    %v123 = vpop.permute.xlu0 %122
    %v124 = vsel %vm96, %v85, 0
    %v126 = vsel %vm96, %v123, 0
    %128 = vmatpush.xpose.msra.mxu0 0.0
    %129 = vmatpush.xpose.msra.mxu0 0.0
    %130 = vmatpush.xpose.msra.mxu0 0.0
    %131 = vmatpush.xpose.msra.mxu0 0.0
    %132 = vmatpush.xpose.msra.mxu0 0.0
    %133 = vmatpush.xpose.msra.mxu0 0.0
    %134 = vmatpush.xpose.msra.mxu0 0.0
    %135 = vmatpush.xpose.msra.mxu0 0.0
    %136 = vmatpush.xpose.msra.mxu0 0.0
    %137 = vmatpush.xpose.msra.mxu0 0.0
    %138 = vmatpush.xpose.msra.mxu0 0.0
    %139 = vmatpush.xpose.msra.mxu0 0.0
    %140 = vmatpush.xpose.msra.mxu0 0.0
    %141 = vmatpush.xpose.msra.mxu0 0.0
    %142 = vmatpush.xpose.msra.mxu0 0.0
    %143 = vmatpush.xpose.msra.mxu0 %v126
    %144 = vmatmul.f32.gmra.mxu0 %v124
    %v145 = vpop.f32.mrf.mxu0
    %v146 = vadd.f32 %v92, %v145
    %147 = vdwg.mxu0
    %vm148 = vcmask 64512
    %v149 = vsel %vm148, %v119, -inf
    %v150 = vrot.slane %v149, 4
    %v151 = vmax.f32 %v149, %v150
    %v152 = vrot.slane %v151, 2
    %v153 = vmax.f32 %v151, %v152
    %v154 = vrot.slane %v153, 1
    %v155 = vmax.f32 %v153, %v154
    %v156 = vsel %vm148, %v146, -inf
    %v157 = vrot.slane %v156, 4
    %v158 = vmax.f32 %v156, %v157
    %v159 = vrot.slane %v158, 2
    %v160 = vmax.f32 %v158, %v159
    %v161 = vrot.slane %v160, 1
    %v162 = vmax.f32 %v160, %v161
    %v163 = vsub.f32 %v119, %v155
    %v164 = vsub.f32 %v146, %v162
    %v165 = vmul.f32 %v163, 1.442695
    %v166 = vpow.pop %v165
    %v167 = vmul.f32 %v164, 1.442695
    %v168 = vpow.pop %v167
    %v169 = vsel %vm148, %v166, 0.0
    %v170 = vrot.slane %v169, 4
    %v171 = vadd.f32 %v169, %v170
    %v172 = vrot.slane %v171, 2
    %v173 = vadd.f32 %v171, %v172
    %v174 = vrot.slane %v173, 1
    %v175 = vadd.f32 %v173, %v174
    %v176 = vsel %vm148, %v168, 0.0
    %v177 = vrot.slane %v176, 4
    %v178 = vadd.f32 %v176, %v177
    %v179 = vrot.slane %v178, 2
    %v180 = vadd.f32 %v178, %v179
    %v181 = vrot.slane %v180, 1
    %v182 = vadd.f32 %v180, %v181
    %v183 = vrcp.pop %v175
    %v184 = vmul.f32 %v175, %v183
    %v185 = vsub.f32 1.0, %v184
    %v186 = vmul.f32 %v183, %v185
    %v187 = vadd.f32 %v183, %v186
    %vm188 = vweird.f32 %v175
    %vm189 = vweird.f32 %v183
    %vm190 = vmor %vm188, %vm189
    %v191 = vsel %vm190, %v183, %v187
    %v192 = vand.u32 2147483647, %v175
    %vm193 = vcmp.eq.f32.partialorder %v192, 8.507059e+37
    %v194 = vand.u32 %v175, 2147483648
    %v195 = vor.u32 1.1754944e-38, %v194
    %v196 = vsel %vm193, %v195, %v191
    %v197 = vrcp.pop %v182
    %v198 = vmul.f32 %v182, %v197
    %v199 = vsub.f32 1.0, %v198
    %v200 = vmul.f32 %v197, %v199
    %v201 = vadd.f32 %v197, %v200
    %vm202 = vweird.f32 %v182
    %vm203 = vweird.f32 %v197
    %vm204 = vmor %vm202, %vm203
    %v205 = vsel %vm204, %v197, %v201
    %v206 = vand.u32 2147483647, %v182
    %vm207 = vcmp.eq.f32.partialorder %v206, 8.507059e+37
    %v208 = vand.u32 %v182, 2147483648
    %v209 = vor.u32 1.1754944e-38, %v208
    %v210 = vsel %vm207, %v209, %v205
    %v211 = vmul.f32 %v166, %v196
    %v212 = vmul.f32 %v168, %v210
    %213 = vrot.lane.b32.xlu0 %v82, 96
    %v214 = vpop.permute.xlu0 %213
    %v217 = vsel %vm148, %v211, 0
    %219 = vmatpush.msra.mxu0 0.0
    %220 = vmatpush.msra.mxu0 0.0
    %221 = vmatpush.msra.mxu0 0.0
    %222 = vmatpush.msra.mxu0 0.0
    %223 = vmatpush.msra.mxu0 0.0
    %224 = vmatpush.msra.mxu0 0.0
    %225 = vmatpush.msra.mxu0 0.0
    %226 = vmatpush.msra.mxu0 0.0
    %227 = vmatpush.msra.mxu0 0.0
    %228 = vmatpush.msra.mxu0 0.0
    %229 = vmatpush.msra.mxu0 0.0
    %230 = vmatpush.msra.mxu0 0.0
    %231 = vmatpush.msra.mxu0 0.0
    %232 = vmatpush.msra.mxu0 0.0
    %233 = vmatpush.msra.mxu0 0.0
    %234 = vmatpush.msra.mxu0 %v214
    %235 = vmatmul.f32.gmra.mxu0 %v217
    %v236 = vpop.f32.mrf.mxu0
    %v237 = vadd.f32 0.0, %v236
    %238 = vdwg.mxu0
    %239 = vrot.lane.b32.xlu0 %v85, 96
    %v240 = vpop.permute.xlu0 %239
    %v243 = vsel %vm148, %v212, 0
    %245 = vmatpush.msra.mxu0 0.0
    %246 = vmatpush.msra.mxu0 0.0
    %247 = vmatpush.msra.mxu0 0.0
    %248 = vmatpush.msra.mxu0 0.0
    %249 = vmatpush.msra.mxu0 0.0
    %250 = vmatpush.msra.mxu0 0.0
    %251 = vmatpush.msra.mxu0 0.0
    %252 = vmatpush.msra.mxu0 0.0
    %253 = vmatpush.msra.mxu0 0.0
    %254 = vmatpush.msra.mxu0 0.0
    %255 = vmatpush.msra.mxu0 0.0
    %256 = vmatpush.msra.mxu0 0.0
    %257 = vmatpush.msra.mxu0 0.0
    %258 = vmatpush.msra.mxu0 0.0
    %259 = vmatpush.msra.mxu0 0.0
    %260 = vmatpush.msra.mxu0 %v240
    %261 = vmatmul.f32.gmra.mxu0 %v243
    %v262 = vpop.f32.mrf.mxu0
    %v263 = vadd.f32 0.0, %v262
    %264 = vdwg.mxu0
    %265 = vst.msk [vmem:[#allocation7] sm:$0xff] %vm57, %v47
    %266 = vst.msk [vmem:[#allocation7 + $0x8] sm:$0xff] %vm57, %v48
    %269 = vrot.lane.b32.xlu0 %v237, 32
    %v270 = vpop.permute.xlu0 %269
    %271 = vrot.lane.b32.xlu0 %v263, 32
    %v272 = vpop.permute.xlu0 %271
    %vm275 = vcmask 392448
    %276 = vst.msk [vmem:[#allocation7] sm:$0xff] %vm275, %v270
    %277 = vst.msk [vmem:[#allocation7 + $0x8] sm:$0xff] %vm275, %v272
    // Predicated region
    $region22: #{tpu_custom_call.1} parent=1 // pred_check
      _
    $region23: #{tpu_custom_call.1} parent=1 // pred_check_branch
      %279 = sbr.rel (0) target = $region25
    $region24: #{tpu_custom_call.1} parent=1 // pred_region
      %281 = vsyncadd [#allocation4], 0
      %s282 = sshll.u32 [#allocation7], 4
      %s283 = int_to_ptr.vmem [resolvable:$true] %s282
      %s284 = sshll.u32 %s3, 4
      %s285 = int_to_ptr.hbm [resolvable:$true] %s284
      %290 = dma.vmem_to_hbm [thread:$0]  %s283, 256, %s285, [#allocation4], 128, 128, 8
    $region25: #{tpu_custom_call.1} parent=1 // pred_fallthru
      _
    // Predicated region
    $region26: #{tpu_custom_call.1} parent=1 // pred_check
      _
    $region27: #{tpu_custom_call.1} parent=1 // pred_check_branch
      %292 = sbr.rel (0) target = $region29
    $region28: #{tpu_custom_call.1} parent=1 // pred_region
      %294 = dma.done [#allocation4], 256
    $region29: #{tpu_custom_call.1} parent=1 // pred_fallthru
      _
    %295 = vsyncpa [#allocation3], 1
    %296 = vsyncpa [#allocation6], 1
    %297 = vsyncpa [#allocation4], 1

</llo_original>
